<compile_context>
chip_gen: v7x
topology: tpu7x:2x2x1
jax: 0.10.0
libtpu: 0.0.40
codegen_flags: <defaults>
</compile_context>

<pallas_src>
import functools

import numpy as np
import jax
import jax.numpy as jnp
from jax.experimental import pallas as pl
from jax.experimental.pallas import tpu as pltpu

_DEFAULT_TILE_ELEMS = 512 * 1024       # ~2 MiB of f32 per input tile (streaming)
_DEFAULT_RESIDENT_ELEMS = 512 * 1024   # per-array element budget for resident path
_VMEM_LIMIT_BYTES = 48 * 1024 * 1024   # safe on v5e/v6e (128 MiB phys) and v7x (64 MiB)


def _choose_tile_h(h, w, target_elems):
    """Pick an H-tile: full H if it fits the target, else a multiple of 8."""
    t = max(1, target_elems // max(w, 1))
    if t >= h:
        return h
    t = max(8, (t // 8) * 8)
    if t >= h:
        return h
    return t


# --------------------------------------------------------------------------- #
# Resident fast path: whole channel-0 slab + gt live in VMEM, single call.
# --------------------------------------------------------------------------- #
def _resident_kernel(p_ref, g_ref, out_ref, *, delta):
    p = p_ref[...].astype(jnp.float32)          # (N, 1, H, W) channel-0 slab
    g = g_ref[...].astype(jnp.float32)
    err = jnp.abs(p - g)
    valid = g > 0.0
    masked_err = jnp.where(valid, err, 0.0)     # err >= 0, so 0 is a safe neutral
    c = jnp.float32(delta) * jnp.max(masked_err)
    count = jnp.sum(valid.astype(jnp.float32))
    inv_2c = jnp.where(c > 0.0, 0.5 / c, 0.0)
    quad = (err * err + c * c) * inv_2c
    val = jnp.where(err > c, quad, err)
    val = jnp.where(valid, val, 0.0)
    # TODO(synk): count == 0 (empty mask) yields NaN here; torch raises instead.
    out_ref[0, 0] = jnp.sum(val) / count


# --------------------------------------------------------------------------- #
# Streaming pass 1: per-tile masked max of |p-g| and masked count (per-lane).
# --------------------------------------------------------------------------- #
def _stats_kernel(p_ref, g_ref, max_ref, cnt_ref, *, h_total, tile_h):
    p = p_ref[0, 0].astype(jnp.float32)         # (tile_h, W)
    g = g_ref[0, 0].astype(jnp.float32)
    row = (pl.program_id(1) * tile_h
           + jax.lax.broadcasted_iota(jnp.int32, p.shape, 0))
    valid = jnp.logical_and(g > 0.0, row < h_total)   # mask ragged H tail too
    err = jnp.abs(p - g)
    masked_err = jnp.where(valid, err, 0.0)
    max_ref[...] = jnp.max(masked_err, axis=0).reshape(1, 1, 1, -1)
    cnt_ref[...] = jnp.sum(valid.astype(jnp.float32), axis=0).reshape(1, 1, 1, -1)


# --------------------------------------------------------------------------- #
# Streaming pass 2: per-tile masked Berhu sum, thresholds via SMEM scalars.
# --------------------------------------------------------------------------- #
def _berhu_sum_kernel(scal_ref, p_ref, g_ref, sum_ref, *, h_total, tile_h):
    c = scal_ref[0]                              # f32 scalars in SMEM
    inv_2c = scal_ref[1]
    p = p_ref[0, 0].astype(jnp.float32)          # (tile_h, W)
    g = g_ref[0, 0].astype(jnp.float32)
    row = (pl.program_id(1) * tile_h
           + jax.lax.broadcasted_iota(jnp.int32, p.shape, 0))
    valid = jnp.logical_and(g > 0.0, row < h_total)
    err = jnp.abs(p - g)
    quad = (err * err + c * c) * inv_2c
    val = jnp.where(err > c, quad, err)
    val = jnp.where(valid, val, 0.0)
    sum_ref[...] = jnp.sum(val, axis=0).reshape(1, 1, 1, -1)


def berhu_loss(prediction, gt, delta=0.05, epoch=0,
               resident_max_elems=_DEFAULT_RESIDENT_ELEMS,
               target_tile_elems=_DEFAULT_TILE_ELEMS):
    """prediction: (N, C, H, W); gt broadcastable to (N, 1, H, W)."""
    del epoch  # unused, kept for torch-forward signature parity
    n, _, h, w = prediction.shape
    if gt.shape != (n, 1, h, w):
        gt = jnp.broadcast_to(gt, (n, 1, h, w))

    total_elems = n * h * w

    # ----------------------------------------------------------------------- #
    # Resident path: one call, each array read once, final loss computed here.
    # ----------------------------------------------------------------------- #
    if total_elems <= resident_max_elems:
        kern = functools.partial(_resident_kernel, delta=float(delta))
        loss = pl.pallas_call(
            kern,
            out_shape=jax.ShapeDtypeStruct((1, 1), jnp.float32),
            grid=(1,),
            in_specs=[
                pl.BlockSpec((n, 1, h, w), lambda i: (0, 0, 0, 0)),  # pred ch 0
                pl.BlockSpec((n, 1, h, w), lambda i: (0, 0, 0, 0)),  # gt
            ],
            out_specs=pl.BlockSpec(memory_space=pltpu.MemorySpace.SMEM),
            compiler_params=pltpu.CompilerParams(
                dimension_semantics=("arbitrary",),
                vmem_limit_bytes=_VMEM_LIMIT_BYTES),
        )(prediction, gt)
        return loss[0, 0]

    # ----------------------------------------------------------------------- #
    # Streaming path: two big-tile passes over (N, H), no wrapper copies.
    # ----------------------------------------------------------------------- #
    tile_h = _choose_tile_h(h, w, target_tile_elems)
    num_h = (h + tile_h - 1) // tile_h

    data_spec = pl.BlockSpec((1, 1, tile_h, w), lambda i, j: (i, 0, j, 0))
    part_spec = pl.BlockSpec((1, 1, 1, w), lambda i, j: (i, j, 0, 0))
    part_shape = jax.ShapeDtypeStruct((n, num_h, 1, w), jnp.float32)

    stats = functools.partial(_stats_kernel, h_total=h, tile_h=tile_h)
    max_part, cnt_part = pl.pallas_call(
        stats,
        out_shape=(part_shape, part_shape),
        grid=(n, num_h),
        in_specs=[data_spec, data_spec],
        out_specs=(part_spec, part_spec),
        compiler_params=pltpu.CompilerParams(
            dimension_semantics=("parallel", "parallel"),
            vmem_limit_bytes=_VMEM_LIMIT_BYTES),
    )(prediction, gt)

    # Tiny scalar glue (only reached for large inputs, where it is negligible).
    err_max = jnp.max(max_part)
    count = jnp.sum(cnt_part)
    c = jnp.float32(delta) * err_max
    inv_2c = jnp.where(c > 0.0, jnp.float32(0.5) / c, jnp.float32(0.0))
    scalars = jnp.stack([c, inv_2c]).astype(jnp.float32)      # (2,) -> SMEM

    bsum = functools.partial(_berhu_sum_kernel, h_total=h, tile_h=tile_h)
    sum_part = pl.pallas_call(
        bsum,
        out_shape=part_shape,
        grid=(n, num_h),
        in_specs=[
            pl.BlockSpec(memory_space=pltpu.MemorySpace.SMEM),  # (c, 1/(2c))
            data_spec,
            data_spec,
        ],
        out_specs=part_spec,
        compiler_params=pltpu.CompilerParams(
            dimension_semantics=("parallel", "parallel"),
            vmem_limit_bytes=_VMEM_LIMIT_BYTES),
    )(scalars, prediction, gt)

    # TODO(synk): count == 0 (empty mask) yields NaN here; torch raises instead.
    return jnp.sum(sum_part) / count


def _reference(prediction, gt, delta=0.05):
    """Pure-JAX reference matching the torch forward."""
    pred = prediction[:, 0:1]
    pred_b, gt_b = jnp.broadcast_arrays(pred, gt)
    err = jnp.abs(pred_b.astype(jnp.float32) - gt_b.astype(jnp.float32))
    mask = gt_b > 0
    c = delta * jnp.max(jnp.where(mask, err, 0.0))
    val = jnp.where(err > c, (err * err + c * c) / (2.0 * c), err)
    val = jnp.where(mask, val, 0.0)
    return jnp.sum(val) / jnp.sum(mask)


if __name__ == "__main__":
    key = jax.random.PRNGKey(0)
    k1, k2, k3, k4 = jax.random.split(key, 4)

    # --- Case 1: module-like small shapes -> exercises the resident path ----
    N, C, H, W = 2, 4, 16, 16
    prediction = jax.random.normal(k1, (N, C, H, W), jnp.float32)
    # gt has both positive (valid) and non-positive (masked-out) entries
    gt = jax.random.uniform(k2, (N, 1, H, W), jnp.float32, minval=-0.5, maxval=1.5)

    loss_fn = jax.jit(functools.partial(berhu_loss, delta=0.05))
    loss = jax.block_until_ready(loss_fn(prediction, gt))
    ref = _reference(prediction, gt, delta=0.05)
    np.testing.assert_allclose(np.asarray(loss), np.asarray(ref),
                               rtol=1e-5, atol=1e-6)

    # --- Case 2: force the streaming two-pass path with a ragged H tile -----
    N2, C2, H2, W2 = 2, 3, 24, 16
    prediction2 = jax.random.normal(k3, (N2, C2, H2, W2), jnp.float32)
    gt2 = jax.random.uniform(k4, (N2, 1, H2, W2), jnp.float32,
                             minval=-0.5, maxval=1.5)

    stream_fn = jax.jit(functools.partial(
        berhu_loss, delta=0.05,
        resident_max_elems=0,          # disable resident path
        target_tile_elems=16 * 16))    # tile_h=16 over H=24 -> partial last tile
    loss2 = jax.block_until_ready(stream_fn(prediction2, gt2))
    ref2 = _reference(prediction2, gt2, delta=0.05)
    np.testing.assert_allclose(np.asarray(loss2), np.asarray(ref2),
                               rtol=1e-5, atol=1e-6)

    print("KERNEL_OK")
</pallas_src>

<mosaic_0001>
module attributes {stable_mosaic.version = 11 : i64} {
  func.func @_resident_kernel(%arg0: i32, %arg1: memref<2x1x16x16xf32, #tpu.memory_space<vmem>>, %arg2: memref<2x1x16x16xf32, #tpu.memory_space<vmem>>, %arg3: memref<1x1xf32, #tpu.memory_space<smem>>) attributes {dimension_semantics = [#tpu.dimension_semantics<arbitrary>], iteration_bounds = array<i64: 1>, scalar_prefetch = 0 : i64, scratch_operands = 0 : i64, tpu.core_type = #tpu.core_type<tc>, window_params = [{transform_indices = @transform_0, window_bounds = array<i64: 2, 1, 16, 16>}, {pipeline_mode = #tpu.pipeline_mode<synchronous>, transform_indices = @transform_1, window_bounds = array<i64: 2, 1, 16, 16>}, {transform_indices = @transform_2, window_bounds = array<i64: 1, 1>}]} {
    %c0 = arith.constant 0 : index
    %c0_0 = arith.constant 0 : index
    %c0_1 = arith.constant 0 : index
    %c0_2 = arith.constant 0 : index
    %0 = vector.load %arg1[%c0, %c0_0, %c0_1, %c0_2] : memref<2x1x16x16xf32, #tpu.memory_space<vmem>>, vector<2x1x16x16xf32>
    %c0_3 = arith.constant 0 : index
    %c0_4 = arith.constant 0 : index
    %c0_5 = arith.constant 0 : index
    %c0_6 = arith.constant 0 : index
    %1 = vector.load %arg2[%c0_3, %c0_4, %c0_5, %c0_6] : memref<2x1x16x16xf32, #tpu.memory_space<vmem>>, vector<2x1x16x16xf32>
    %2 = arith.subf %0, %1 : vector<2x1x16x16xf32>
    %3 = math.absf %2 : vector<2x1x16x16xf32>
    %cst = arith.constant 0.000000e+00 : f32
    %4 = vector.broadcast %cst : f32 to vector<2x1x16x16xf32>
    %5 = arith.cmpf ogt, %1, %4 : vector<2x1x16x16xf32>
    %cst_7 = arith.constant 0.000000e+00 : f32
    %6 = vector.broadcast %cst_7 : f32 to vector<2x1x16x16xf32>
    %7 = arith.select %5, %3, %6 : vector<2x1x16x16xi1>, vector<2x1x16x16xf32>
    %8 = vector.shape_cast %7 : vector<2x1x16x16xf32> to vector<1x2x1x16x16xf32>
    %cst_8 = arith.constant dense<0xFF800000> : vector<1xf32>
    %9 = vector.multi_reduction <maximumf>, %8, %cst_8 [1, 2, 3, 4] : vector<1x2x1x16x16xf32> to vector<1xf32>
    %10 = vector.shape_cast %9 : vector<1xf32> to vector<1x1x1x1x1xf32>
    %11 = vector.extract %10[0, 0, 0, 0, 0] : f32 from vector<1x1x1x1x1xf32>
    %cst_9 = arith.constant 5.000000e-02 : f32
    %12 = arith.mulf %cst_9, %11 : f32
    %13 = arith.extui %5 : vector<2x1x16x16xi1> to vector<2x1x16x16xi32>
    %14 = arith.sitofp %13 : vector<2x1x16x16xi32> to vector<2x1x16x16xf32>
    %15 = vector.shape_cast %14 : vector<2x1x16x16xf32> to vector<1x2x1x16x16xf32>
    %cst_10 = arith.constant dense<0.000000e+00> : vector<1xf32>
    %16 = vector.multi_reduction <add>, %15, %cst_10 [1, 2, 3, 4] : vector<1x2x1x16x16xf32> to vector<1xf32>
    %17 = vector.shape_cast %16 : vector<1xf32> to vector<1x1x1x1x1xf32>
    %18 = vector.extract %17[0, 0, 0, 0, 0] : f32 from vector<1x1x1x1x1xf32>
    %cst_11 = arith.constant 0.000000e+00 : f32
    %19 = arith.cmpf ogt, %12, %cst_11 : f32
    %cst_12 = arith.constant 5.000000e-01 : f32
    %20 = arith.divf %cst_12, %12 : f32
    %cst_13 = arith.constant 0.000000e+00 : f32
    %21 = arith.select %19, %20, %cst_13 : f32
    %22 = arith.mulf %3, %3 : vector<2x1x16x16xf32>
    %23 = arith.mulf %12, %12 : f32
    %24 = vector.broadcast %23 : f32 to vector<2x1x16x16xf32>
    %25 = arith.addf %22, %24 : vector<2x1x16x16xf32>
    %26 = vector.broadcast %21 : f32 to vector<2x1x16x16xf32>
    %27 = arith.mulf %25, %26 : vector<2x1x16x16xf32>
    %28 = vector.broadcast %12 : f32 to vector<2x1x16x16xf32>
    %29 = arith.cmpf ogt, %3, %28 : vector<2x1x16x16xf32>
    %30 = arith.select %29, %27, %3 : vector<2x1x16x16xi1>, vector<2x1x16x16xf32>
    %cst_14 = arith.constant 0.000000e+00 : f32
    %31 = vector.broadcast %cst_14 : f32 to vector<2x1x16x16xf32>
    %32 = arith.select %5, %30, %31 : vector<2x1x16x16xi1>, vector<2x1x16x16xf32>
    %33 = vector.shape_cast %32 : vector<2x1x16x16xf32> to vector<1x2x1x16x16xf32>
    %cst_15 = arith.constant dense<0.000000e+00> : vector<1xf32>
    %34 = vector.multi_reduction <add>, %33, %cst_15 [1, 2, 3, 4] : vector<1x2x1x16x16xf32> to vector<1xf32>
    %35 = vector.shape_cast %34 : vector<1xf32> to vector<1x1x1x1x1xf32>
    %36 = vector.extract %35[0, 0, 0, 0, 0] : f32 from vector<1x1x1x1x1xf32>
    %37 = arith.divf %36, %18 : f32
    %c0_16 = arith.constant 0 : index
    %c0_17 = arith.constant 0 : index
    %38 = memref.load %arg3[%c0_16, %c0_17] : memref<1x1xf32, #tpu.memory_space<smem>>
    memref.store %37, %arg3[%c0_16, %c0_17] : memref<1x1xf32, #tpu.memory_space<smem>>
    return
  }
  func.func @transform_0(%arg0: i32) -> (i32, i32, i32, i32) {
    %c0_i32 = arith.constant 0 : i32
    %c0_i32_0 = arith.constant 0 : i32
    %c0_i32_1 = arith.constant 0 : i32
    %c0_i32_2 = arith.constant 0 : i32
    %c0_i32_3 = arith.constant 0 : i32
    return %c0_i32, %c0_i32_0, %c0_i32_1, %c0_i32_2 : i32, i32, i32, i32
  }
  func.func @transform_1(%arg0: i32) -> (i32, i32, i32, i32) {
    %c0_i32 = arith.constant 0 : i32
    %c0_i32_0 = arith.constant 0 : i32
    %c0_i32_1 = arith.constant 0 : i32
    %c0_i32_2 = arith.constant 0 : i32
    %c0_i32_3 = arith.constant 0 : i32
    return %c0_i32, %c0_i32_0, %c0_i32_1, %c0_i32_2 : i32, i32, i32, i32
  }
  func.func @transform_2(%arg0: i32) -> (i32, i32) {
    %c0_i32 = arith.constant 0 : i32
    %c0_i32_0 = arith.constant 0 : i32
    %c0_i32_1 = arith.constant 0 : i32
    return %c0_i32, %c0_i32_0 : i32, i32
  }
}

</mosaic_0001>

<llo_original>
// kernel: berhu_loss.1
$region0: #{berhu_loss.1}
  #allocation0 [shape = 'u32[]', space=smem, size = 0x4, offset = 0x4, fixed_abs, tag = 'smem constant byte address 0x4 - core index']
  #allocation1 [shape = 'u32[144,128]{1,0:T(1,128)}', space=vmem, size = 0x12000, scoped, tag = 'internal scratch']
  #allocation8 [shape = 's32[]', space=sflag, size = 0x4, offset = 0, fixed_abs, tag = 'sflag constant byte address 0x0 - dummy sync flag']
  %s0 = inlined_call_operand.hbm [shape: f32[2,4,16,16], index: 0, kind: input, shape index: {}]
  %s1 = inlined_call_operand.hbm [shape: f32[2,1,16,16], index: 1, kind: input, shape index: {}]
  %s2 = inlined_call_operand.hbm [shape: f32[1,1], index: 2, kind: output, shape index: {}]
  %s3 = sld [smem:[#allocation0]]
  $region26: #{berhu_loss.1} parent=0
    _
  %s5 = ssub.s32 1, %s3
  %s6 = scalar_select 0, %s5, %s3
  $region1: #{berhu_loss.1} parent=0
    #allocation2 [shape = 'u8[16384]{0}', space=vmem, size = 0x4000, scoped, tag = 'input window, operand 0, single buffered']
    #allocation3 [shape = 's32[1]{0}', space=sflag, size = 0x4, scoped, tag = 'scoped memory for berhu_loss.1']
    #allocation4 [shape = 's32[1]{0}', space=sflag, size = 0x4, scoped, tag = 'scoped memory for berhu_loss.1']
    #allocation5 [shape = 'u8[16384]{0}', space=vmem, size = 0x4000, scoped, tag = 'input window, operand 1, single buffered']
    #allocation6 [shape = 's32[1]{0}', space=sflag, size = 0x4, scoped, tag = 'scoped memory for berhu_loss.1']
    #allocation7 [shape = 'u8[512]{0}', space=smem, size = 0x200, scoped, tag = 'output window, operand 0, single buffered']
    %7 = vsyncpa [#allocation3], 0
    %8 = vsyncpa [#allocation6], 0
    %9 = vsyncpa [#allocation4], 0
    // Predicated region
    $region2: #{berhu_loss.1} parent=1 // pred_check
      _
    $region3: #{berhu_loss.1} parent=1 // pred_check_branch
      %11 = sbr.rel (0) target = $region5
    $region4: #{berhu_loss.1} parent=1 // pred_region
      #allocation9 [shape = 'u32[6]{0}', space=smem, size = 0x18, scoped, tag = 'DMA stride descriptor']
      %s13 = ssub.s32 512, 512
      %14 = vsyncadd [#allocation3], %s13
      %s16 = sshll.u32 1, 14
      %s17 = sxor.u32 4294967295, %s16
      %s19 = sld [smem:[#allocation0]]
      %s20 = sadd.s32 2, %s19
      %s22 = sshll.u32 7, 26
      %s23 = sxor.u32 4294967295, %s22
      %s24 = sand.u32 0, %s23
      %s25 = sshll.u32 %s20, 26
      %s26 = sor.u32 %s24, %s25
      %s27 = sshll.u32 [#allocation2], 4
      %s28 = int_to_ptr.vmem [resolvable:$true] %s27
      %34 = sst [smem:[#allocation9]] 1024
      %s35 = scalar_lea.smem [#allocation9], 1
      %36 = sst [smem:[%s35]] 256
      %s37 = scalar_lea.smem [#allocation9], 2
      %38 = sst [smem:[%s37]] 2
      %s39 = scalar_lea.smem [#allocation9], 3
      %40 = sst [smem:[%s39]] 128
      %s41 = scalar_lea.smem [#allocation9], 4
      %42 = sst [smem:[%s41]] 128
      %s43 = scalar_lea.smem [#allocation9], 5
      %44 = sst [smem:[%s43]] 8
      %46 = dma.general %s0, 512, %s28, [#allocation3], [#allocation8], [#allocation9], %s26, 0
    $region5: #{berhu_loss.1} parent=1 // pred_fallthru
      _
    // Predicated region
    $region6: #{berhu_loss.1} parent=1 // pred_check
      _
    $region7: #{berhu_loss.1} parent=1 // pred_check_branch
      %48 = sbr.rel (0) target = $region9
    $region8: #{berhu_loss.1} parent=1 // pred_region
      %s50 = ssub.s32 512, 512
      %51 = vsyncadd [#allocation6], %s50
      %s52 = sshll.u32 [#allocation5], 4
      %s53 = int_to_ptr.vmem [resolvable:$true] %s52
      %58 = dma.hbm_to_vmem [thread:$0]  %s1, 512, %s53, [#allocation6], 128, 128, 8
    $region9: #{berhu_loss.1} parent=1 // pred_fallthru
      _
    // Predicated region
    $region10: #{berhu_loss.1} parent=1 // pred_check
      _
    $region11: #{berhu_loss.1} parent=1 // pred_check_branch
      %60 = sbr.rel (0) target = $region13
    $region12: #{berhu_loss.1} parent=1 // pred_region
      %61 = dma.done [#allocation3], 512
    $region13: #{berhu_loss.1} parent=1 // pred_fallthru
      _
    // Predicated region
    $region14: #{berhu_loss.1} parent=1 // pred_check
      _
    $region15: #{berhu_loss.1} parent=1 // pred_check_branch
      %63 = sbr.rel (0) target = $region17
    $region16: #{berhu_loss.1} parent=1 // pred_region
      %64 = dma.done [#allocation6], 512
    $region17: #{berhu_loss.1} parent=1 // pred_fallthru
      _
    %v65 = vld [vmem:[#allocation2] sm:$0xff]
    %v66 = vld [vmem:[#allocation2 + $0x8] sm:$0xff]
    %v67 = vld [vmem:[#allocation2 + $0x10] sm:$0xff]
    %v68 = vld [vmem:[#allocation2 + $0x18] sm:$0xff]
    %v69 = vld [vmem:[#allocation5] sm:$0xff]
    %v70 = vld [vmem:[#allocation5 + $0x8] sm:$0xff]
    %v71 = vld [vmem:[#allocation5 + $0x10] sm:$0xff]
    %v72 = vld [vmem:[#allocation5 + $0x18] sm:$0xff]
    %v73 = vsub.f32 %v65, %v69
    %v74 = vsub.f32 %v66, %v70
    %v75 = vsub.f32 %v67, %v71
    %v76 = vsub.f32 %v68, %v72
    %v77 = vand.u32 2147483647, %v73
    %v78 = vand.u32 2147483647, %v74
    %v79 = vand.u32 2147483647, %v75
    %v80 = vand.u32 2147483647, %v76
    %vm81 = vcmp.gt.f32.partialorder %v69, 0.0
    %vm82 = vcmp.gt.f32.partialorder %v70, 0.0
    %vm83 = vcmp.gt.f32.partialorder %v71, 0.0
    %vm84 = vcmp.gt.f32.partialorder %v72, 0.0
    %v85 = vsel %vm81, %v77, 0.0
    %v86 = vsel %vm82, %v78, 0.0
    %v87 = vsel %vm83, %v79, 0.0
    %v88 = vsel %vm84, %v80, 0.0
    %vm89 = vcmask 130048
    %v90 = vsel %vm89, %v85, -inf
    %v91 = vsel %vm89, %v86, -inf
    %v92 = vsel %vm89, %v87, -inf
    %v93 = vsel %vm89, %v88, -inf
    %v94 = vmax.f32 %v90, %v91
    %v95 = vmax.f32 %v92, %v93
    %v96 = vmax.f32 %v94, %v95
    %97 = vmax.xlane.f32.xlu0 %v96
    %v98 = vpop.xlane.xlu0 %97
    %v99 = vrot.slane %v98, 4
    %v100 = vmax.f32 %v98, %v99
    %v101 = vrot.slane %v100, 2
    %v102 = vmax.f32 %v100, %v101
    %v103 = vrot.slane %v102, 1
    %v104 = vmax.f32 %v102, %v103
    %s105 = vtos %v104
    %s106 = smul.f32 %s105, 0.05
    %v107 = vsel %vm81, 1, 0
    %v108 = vsel %vm82, 1, 0
    %v109 = vsel %vm83, 1, 0
    %v110 = vsel %vm84, 1, 0
    %v111 = vcvt.s32.f32 %v107
    %v112 = vcvt.s32.f32 %v108
    %v113 = vcvt.s32.f32 %v109
    %v114 = vcvt.s32.f32 %v110
    %v115 = vsel %vm89, %v111, 0.0
    %v116 = vsel %vm89, %v112, 0.0
    %v117 = vadd.f32 %v115, %v116
    %v118 = vsel %vm89, %v113, 0.0
    %v119 = vadd.f32 %v117, %v118
    %v120 = vsel %vm89, %v114, 0.0
    %v121 = vadd.f32 %v119, %v120
    %122 = vadd.xlane.f32.xlu0 %v121
    %v123 = vpop.xlane.xlu0 %122
    %v124 = vrot.slane %v123, 4
    %v125 = vadd.f32 %v123, %v124
    %v126 = vrot.slane %v125, 2
    %v127 = vadd.f32 %v125, %v126
    %v128 = vrot.slane %v127, 1
    %v129 = vadd.f32 %v127, %v128
    %s130 = vtos %v129
    %p131 = scmp.gt.f32.partialorder %s106, 0.0
    %v132 = vstv %s106
    %v133 = vrcp.pop %v132
    %s134 = vtos %v133
    %s135 = smul.f32 0.5, %s134
    %s136 = scalar_select %p131, %s135, 0.0
    %v137 = vmul.f32 %v77, %v77
    %v138 = vmul.f32 %v78, %v78
    %v139 = vmul.f32 %v79, %v79
    %v140 = vmul.f32 %v80, %v80
    %s141 = smul.f32 %s106, %s106
    %v142 = vstv %s141
    %v143 = vadd.f32 %v137, %v142
    %v144 = vadd.f32 %v138, %v142
    %v145 = vadd.f32 %v139, %v142
    %v146 = vadd.f32 %v140, %v142
    %v147 = vstv %s136
    %v148 = vmul.f32 %v143, %v147
    %v149 = vmul.f32 %v144, %v147
    %v150 = vmul.f32 %v145, %v147
    %v151 = vmul.f32 %v146, %v147
    %v152 = vstv %s106
    %vm153 = vcmp.gt.f32.partialorder %v77, %v152
    %vm154 = vcmp.gt.f32.partialorder %v78, %v152
    %vm155 = vcmp.gt.f32.partialorder %v79, %v152
    %vm156 = vcmp.gt.f32.partialorder %v80, %v152
    %v157 = vsel %vm153, %v148, %v77
    %v158 = vsel %vm154, %v149, %v78
    %v159 = vsel %vm155, %v150, %v79
    %v160 = vsel %vm156, %v151, %v80
    %v161 = vsel %vm81, %v157, 0.0
    %v162 = vsel %vm82, %v158, 0.0
    %v163 = vsel %vm83, %v159, 0.0
    %v164 = vsel %vm84, %v160, 0.0
    %v165 = vsel %vm89, %v161, 0.0
    %v166 = vsel %vm89, %v162, 0.0
    %v167 = vadd.f32 %v165, %v166
    %v168 = vsel %vm89, %v163, 0.0
    %v169 = vadd.f32 %v167, %v168
    %v170 = vsel %vm89, %v164, 0.0
    %v171 = vadd.f32 %v169, %v170
    %172 = vadd.xlane.f32.xlu0 %v171
    %v173 = vpop.xlane.xlu0 %172
    %v174 = vrot.slane %v173, 4
    %v175 = vadd.f32 %v173, %v174
    %v176 = vrot.slane %v175, 2
    %v177 = vadd.f32 %v175, %v176
    %v178 = vrot.slane %v177, 1
    %v179 = vadd.f32 %v177, %v178
    %s180 = vtos %v179
    %v181 = vstv %s130
    %v182 = vrcp.pop %v181
    %s183 = vtos %v182
    %s184 = smul.f32 %s180, %s183
    %s185 = scalar_lea.smem [#allocation7], 0
    %186 = sst [smem:[%s185]] %s184
    // Predicated region
    $region18: #{berhu_loss.1} parent=1 // pred_check
      _
    $region19: #{berhu_loss.1} parent=1 // pred_check_branch
      %188 = sbr.rel (0) target = $region21
    $region20: #{berhu_loss.1} parent=1 // pred_region
      %s190 = ssub.s32 16, 16
      %191 = vsyncadd [#allocation4], %s190
      %194 = dma.smem_to_hbm [#allocation7], 16, %s2, [#allocation4]
    $region21: #{berhu_loss.1} parent=1 // pred_fallthru
      _
    // Predicated region
    $region22: #{berhu_loss.1} parent=1 // pred_check
      _
    $region23: #{berhu_loss.1} parent=1 // pred_check_branch
      %196 = sbr.rel (0) target = $region25
    $region24: #{berhu_loss.1} parent=1 // pred_region
      %197 = dma.done [#allocation4], 16
    $region25: #{berhu_loss.1} parent=1 // pred_fallthru
      _
    %198 = sfence
    %199 = vsyncpa [#allocation3], 1
    %200 = vsyncpa [#allocation6], 1
    %201 = vsyncpa [#allocation4], 1

</llo_original>
